<compile_context>
chip_gen: v7x
topology: tpu7x:2x2x1
jax: 0.10.0
libtpu: 0.0.40
codegen_flags: <defaults>
</compile_context>

<pallas_src>
import jax
import jax.numpy as jnp
from jax.experimental import pallas as pl
from jax.experimental.pallas import tpu as pltpu

_LANES = 128       # vreg lane width
_SUBLANES = 8      # f32 vreg sublane count
_TILE_ROWS = 512   # packed sublane-rows per grid step (3*256 KiB in, 256 KiB out)


def _mac_kernel(wb_ref, x_ref, o_ref):
    # wb_ref: SMEM (4,)          f32  = [w0, w1, w2, b]
    # x_ref : VMEM (3, R, 128)   f32  -- feature planes, batch packed (sublane, lane)
    # o_ref : VMEM (R, 128)      f32
    w0 = wb_ref[0]
    w1 = wb_ref[1]
    w2 = wb_ref[2]
    b = wb_ref[3]
    # VPU multiply-accumulate; no MXU for this K=3, N=1 "matmul".
    o_ref[...] = x_ref[0] * w0 + x_ref[1] * w1 + x_ref[2] * w2 + b


@jax.jit
def non_standard_io_model(x, weight, bias):
    """Pallas equivalent of NonStandardIOModel.forward.

    x:      dict with 'data1', 'data2' arrays of shape (B, 3) float32
    weight: (1, 3) float32  (PyTorch Linear layout: (out_features, in_features))
    bias:   (1,)   float32
    returns dict with 'res1', 'res2' arrays of shape (B, 1) float32
    """
    x1 = x['data1']
    x2 = x['data2']
    B, K = x1.shape
    assert K == 3 and x2.shape == (B, K)

    # Fuse the two applications of the shared Linear into one problem.
    xc = jnp.concatenate([x1, x2], axis=0).astype(jnp.float32)      # (2B, 3)
    n = 2 * B

    # Pack batch index j -> (row=j//128, lane=j%128) so vregs are fully dense.
    rows = pl.cdiv(n, _LANES)
    if rows <= _TILE_ROWS:
        rows = max(_SUBLANES, ((rows + _SUBLANES - 1) // _SUBLANES) * _SUBLANES)
        grid = None
    else:
        rows = ((rows + _TILE_ROWS - 1) // _TILE_ROWS) * _TILE_ROWS
        grid = rows // _TILE_ROWS

    n_pad = rows * _LANES
    xp = jnp.pad(xc, ((0, n_pad - n), (0, 0)))                      # (n_pad, 3)
    xt = xp.T.reshape(K, rows, _LANES)                              # (3, rows, 128)

    # weight/bias as SMEM scalars: [w0, w1, w2, b]
    wb = jnp.concatenate(
        [weight.reshape(-1), bias.reshape(-1)]).astype(jnp.float32)  # (4,)

    out_struct = jax.ShapeDtypeStruct((rows, _LANES), jnp.float32)

    if grid is None:
        # Whole problem fits in one small VMEM block: no grid, no index maps,
        # no per-step pipeline bookkeeping.
        out = pl.pallas_call(
            _mac_kernel,
            out_shape=out_struct,
            in_specs=[
                pl.BlockSpec(memory_space=pltpu.MemorySpace.SMEM),
                pl.BlockSpec(memory_space=pltpu.MemorySpace.VMEM),
            ],
            out_specs=pl.BlockSpec(memory_space=pltpu.MemorySpace.VMEM),
        )(wb, xt)
    else:
        # Large batch: tile the packed rows; parallel grid axis is sharded across
        # both TensorCores on v7x and is harmless on v5e/v6e.
        out = pl.pallas_call(
            _mac_kernel,
            out_shape=out_struct,
            grid=(grid,),
            in_specs=[
                pl.BlockSpec(memory_space=pltpu.MemorySpace.SMEM),
                pl.BlockSpec((K, _TILE_ROWS, _LANES), lambda i: (0, i, 0)),
            ],
            out_specs=pl.BlockSpec((_TILE_ROWS, _LANES), lambda i: (i, 0)),
            compiler_params=pltpu.CompilerParams(
                dimension_semantics=("parallel",)),
        )(wb, xt)

    out_flat = out.reshape(n_pad)[:n]                               # (2B,)
    res1 = out_flat[:B].reshape(B, 1).astype(x1.dtype)
    res2 = out_flat[B:].reshape(B, 1).astype(x2.dtype)
    return {'res1': res1, 'res2': res2}


def _reference(x, weight, bias):
    return {'res1': x['data1'] @ weight.T + bias,
            'res2': x['data2'] @ weight.T + bias}


if __name__ == "__main__":
    key = jax.random.PRNGKey(0)
    k_w, k_b, k_x1, k_x2 = jax.random.split(key, 4)

    # Parameter init mimicking torch.nn.Linear(3, 1): U(-1/sqrt(3), 1/sqrt(3))
    bound = 1.0 / (3.0 ** 0.5)
    weight = jax.random.uniform(k_w, (1, 3), jnp.float32, -bound, bound)
    bias = jax.random.uniform(k_b, (1,), jnp.float32, -bound, bound)

    # Small deterministic example (exercises the single-block, no-grid path).
    B = 8
    x = {
        'data1': jax.random.normal(k_x1, (B, 3), jnp.float32),
        'data2': jax.random.normal(k_x2, (B, 3), jnp.float32),
    }
    out = non_standard_io_model(x, weight, bias)
    jax.block_until_ready(out)

    ref = _reference(x, weight, bias)
    assert out['res1'].shape == (B, 1) and out['res2'].shape == (B, 1)
    assert jnp.allclose(out['res1'], ref['res1'], atol=1e-5)
    assert jnp.allclose(out['res2'], ref['res2'], atol=1e-5)

    # Larger batch (exercises the tiled, "parallel"-grid path).
    k_y1, k_y2 = jax.random.split(jax.random.PRNGKey(1))
    Bl = 40000  # 2*Bl / 128 = 625 rows > _TILE_ROWS -> grid path
    xl = {
        'data1': jax.random.normal(k_y1, (Bl, 3), jnp.float32),
        'data2': jax.random.normal(k_y2, (Bl, 3), jnp.float32),
    }
    out_l = non_standard_io_model(xl, weight, bias)
    jax.block_until_ready(out_l)
    ref_l = _reference(xl, weight, bias)
    assert jnp.allclose(out_l['res1'], ref_l['res1'], atol=1e-5)
    assert jnp.allclose(out_l['res2'], ref_l['res2'], atol=1e-5)

    print("KERNEL_OK")
</pallas_src>

<mosaic_0001>
module attributes {stable_mosaic.version = 11 : i64} {
  func.func @_mac_kernel(%arg0: memref<4xf32, #tpu.memory_space<smem>>, %arg1: memref<3x8x128xf32, #tpu.memory_space<vmem>>, %arg2: memref<8x128xf32, #tpu.memory_space<vmem>>) attributes {dimension_semantics = [], scalar_prefetch = 0 : i64, scratch_operands = 0 : i64, tpu.core_type = #tpu.core_type<tc>} {
    %c0 = arith.constant 0 : index
    %0 = memref.load %arg0[%c0] : memref<4xf32, #tpu.memory_space<smem>>
    %c1 = arith.constant 1 : index
    %1 = memref.load %arg0[%c1] : memref<4xf32, #tpu.memory_space<smem>>
    %c2 = arith.constant 2 : index
    %2 = memref.load %arg0[%c2] : memref<4xf32, #tpu.memory_space<smem>>
    %c3 = arith.constant 3 : index
    %3 = memref.load %arg0[%c3] : memref<4xf32, #tpu.memory_space<smem>>
    %c0_0 = arith.constant 0 : index
    %c0_1 = arith.constant 0 : index
    %c0_2 = arith.constant 0 : index
    %4 = vector.load %arg1[%c0_0, %c0_1, %c0_2] : memref<3x8x128xf32, #tpu.memory_space<vmem>>, vector<1x8x128xf32>
    %5 = vector.shape_cast %4 : vector<1x8x128xf32> to vector<8x128xf32>
    %6 = vector.broadcast %0 : f32 to vector<8x128xf32>
    %7 = arith.mulf %5, %6 : vector<8x128xf32>
    %c1_3 = arith.constant 1 : index
    %c0_4 = arith.constant 0 : index
    %c0_5 = arith.constant 0 : index
    %8 = vector.load %arg1[%c1_3, %c0_4, %c0_5] : memref<3x8x128xf32, #tpu.memory_space<vmem>>, vector<1x8x128xf32>
    %9 = vector.shape_cast %8 : vector<1x8x128xf32> to vector<8x128xf32>
    %10 = vector.broadcast %1 : f32 to vector<8x128xf32>
    %11 = arith.mulf %9, %10 : vector<8x128xf32>
    %12 = arith.addf %7, %11 : vector<8x128xf32>
    %c2_6 = arith.constant 2 : index
    %c0_7 = arith.constant 0 : index
    %c0_8 = arith.constant 0 : index
    %13 = vector.load %arg1[%c2_6, %c0_7, %c0_8] : memref<3x8x128xf32, #tpu.memory_space<vmem>>, vector<1x8x128xf32>
    %14 = vector.shape_cast %13 : vector<1x8x128xf32> to vector<8x128xf32>
    %15 = vector.broadcast %2 : f32 to vector<8x128xf32>
    %16 = arith.mulf %14, %15 : vector<8x128xf32>
    %17 = arith.addf %12, %16 : vector<8x128xf32>
    %18 = vector.broadcast %3 : f32 to vector<8x128xf32>
    %19 = arith.addf %17, %18 : vector<8x128xf32>
    %c0_9 = arith.constant 0 : index
    %c0_10 = arith.constant 0 : index
    %20 = vector.load %arg2[%c0_9, %c0_10] : memref<8x128xf32, #tpu.memory_space<vmem>>, vector<8x128xf32>
    tpu.vector_store %arg2[%c0_9, %c0_10], %19 {strides = array<i32>} : memref<8x128xf32, #tpu.memory_space<vmem>>, vector<8x128xf32>,
    return
  }
}

</mosaic_0001>

<llo_original>
// kernel: non_standard_io_model.1
$region0: #{non_standard_io_model.1}
  #allocation0 [shape = 'u32[]', space=smem, size = 0x4, offset = 0x4, fixed_abs, tag = 'smem constant byte address 0x4 - core index']
  #allocation1 [shape = 'u32[144,128]{1,0:T(1,128)}', space=vmem, size = 0x12000, scoped, tag = 'internal scratch']
  %s0 = inlined_call_operand.vmem [shape: f32[4], index: 0, kind: input, shape index: {}]
  %s1 = inlined_call_operand.vmem [shape: f32[3,8,128], index: 1, kind: input, shape index: {}]
  %s2 = inlined_call_operand.vmem [shape: f32[8,128], index: 2, kind: output, shape index: {}]
  %s3 = sld [smem:[#allocation0]]
  $region22: #{non_standard_io_model.1} parent=0
    _
  %s5 = ssub.s32 1, %s3
  %s6 = scalar_select 0, %s5, %s3
  $region1: #{non_standard_io_model.1} parent=0
    #allocation2 [shape = 'u8[512]{0}', space=smem, size = 0x200, scoped, tag = 'input window, operand 0, single buffered']
    #allocation3 [shape = 's32[1]{0}', space=sflag, size = 0x4, scoped, tag = 'scoped memory for non_standard_io_model.1']
    %7 = vsyncpa [#allocation3], 0
    // Predicated region
    $region2: #{non_standard_io_model.1} parent=1 // pred_check
      _
    $region3: #{non_standard_io_model.1} parent=1 // pred_check_branch
      %9 = sbr.rel (0) target = $region5
    $region4: #{non_standard_io_model.1} parent=1 // pred_region
      %s11 = ssub.s32 16, 16
      %12 = vsyncadd [#allocation3], %s11
      %s14 = sshll.u32 %s0, 4
      %s15 = int_to_ptr.vmem [resolvable:$true] %s14
      %17 = dma.vmem_to_smem %s15, 16, [#allocation2], [#allocation3]
    $region5: #{non_standard_io_model.1} parent=1 // pred_fallthru
      _
    // Predicated region
    $region6: #{non_standard_io_model.1} parent=1 // pred_check
      _
    $region7: #{non_standard_io_model.1} parent=1 // pred_check_branch
      %19 = sbr.rel (0) target = $region9
    $region8: #{non_standard_io_model.1} parent=1 // pred_region
      _
    $region9: #{non_standard_io_model.1} parent=1 // pred_fallthru
      _
    // Predicated region
    $region10: #{non_standard_io_model.1} parent=1 // pred_check
      _
    $region11: #{non_standard_io_model.1} parent=1 // pred_check_branch
      %21 = sbr.rel (0) target = $region13
    $region12: #{non_standard_io_model.1} parent=1 // pred_region
      %22 = dma.done [#allocation3], 16
    $region13: #{non_standard_io_model.1} parent=1 // pred_fallthru
      _
    %23 = sfence
    %s24 = sld [smem:[#allocation2]]
    %s25 = sld [smem:[#allocation2 + $0x1]]
    %s26 = sld [smem:[#allocation2 + $0x2]]
    %s27 = sld [smem:[#allocation2 + $0x3]]
    %v28 = vld [vmem:[%s1] sm:$0xff]
    %v29 = vstv %s24
    %v30 = vmul.f32 %v28, %v29
    %s31 = scalar_lea.vmem %s1, 8
    %v32 = vld [vmem:[%s31] sm:$0xff]
    %v33 = vstv %s25
    %v34 = vmul.f32 %v32, %v33
    %v35 = vadd.f32 %v30, %v34
    %s36 = scalar_lea.vmem %s1, 16
    %v37 = vld [vmem:[%s36] sm:$0xff]
    %v38 = vstv %s26
    %v39 = vmul.f32 %v37, %v38
    %v40 = vadd.f32 %v35, %v39
    %v41 = vstv %s27
    %v42 = vadd.f32 %v40, %v41
    %43 = vst [vmem:[%s2] sm:$0xff] %v42
    // Predicated region
    $region14: #{non_standard_io_model.1} parent=1 // pred_check
      _
    $region15: #{non_standard_io_model.1} parent=1 // pred_check_branch
      %45 = sbr.rel (0) target = $region17
    $region16: #{non_standard_io_model.1} parent=1 // pred_region
      _
    $region17: #{non_standard_io_model.1} parent=1 // pred_fallthru
      _
    // Predicated region
    $region18: #{non_standard_io_model.1} parent=1 // pred_check
      _
    $region19: #{non_standard_io_model.1} parent=1 // pred_check_branch
      %47 = sbr.rel (0) target = $region21
    $region20: #{non_standard_io_model.1} parent=1 // pred_region
      _
    $region21: #{non_standard_io_model.1} parent=1 // pred_fallthru
      _
    %48 = vsyncpa [#allocation3], 1

</llo_original>
